<compile_context>
chip_gen: v7x
topology: tpu7x:2x2x1
jax: 0.10.0
libtpu: 0.0.40
codegen_flags: <defaults>
</compile_context>

<pallas_src>
import functools
import math

import jax
import jax.numpy as jnp
from jax.experimental import pallas as pl
from jax.experimental.pallas import tpu as pltpu


# ------------------------------ small helpers ------------------------------ #

def _round_up(x, m):
    return ((x + m - 1) // m) * m


def _pick_tile(dim, candidates=(512, 256, 128)):
    """Largest candidate that divides dim (dim is always a multiple of 128)."""
    for c in candidates:
        if dim % c == 0:
            return c
    return dim


def _vmem_capacity_bytes():
    try:
        return int(pltpu.get_tpu_info().vmem_capacity_bytes)
    except Exception:
        return 64 * 1024 * 1024        # conservative (v7x per-core VMEM)


def _tile_footprint_bytes(tm, tn, tk):
    """Approximate double-buffered pipeline footprint for one grid step."""
    x_b = 2 * tm * tk * 2              # bf16 input block
    w_b = 2 * tk * tn * 2              # bf16 weight block
    b_b = 2 * 8 * tn * 4               # f32 bias block (1 row pads to 8 sublanes)
    o_b = 2 * tm * tn * 4              # f32 output block (doubles as accumulator)
    return x_b + w_b + b_b + o_b


# --------------------------- in-kernel activation --------------------------- #

def _apply_act_kernel(y, name, valid_cols):
    """Activations applied inside the kernel (f32 epilogue)."""
    if name is None:
        return y
    if name == 'relu':
        return jnp.maximum(y, 0.0)
    if name == 'sigmoid':
        return jax.nn.sigmoid(y)
    if name == 'tanh':
        return jnp.tanh(y)
    if name == 'elu':
        return jnp.where(y > 0.0, y, jnp.expm1(y))
    if name == 'softplus':
        return jnp.log1p(jnp.exp(-jnp.abs(y))) + jnp.maximum(y, 0.0)
    if name == 'softmax':
        # Row softmax over features; padded feature columns are masked out.
        if valid_cols < y.shape[1]:
            cid = jax.lax.broadcasted_iota(jnp.int32, y.shape, 1)
            y = jnp.where(cid < valid_cols, y, -1e30)
        m = jnp.max(y, axis=1, keepdims=True)
        e = jnp.exp(y - m)
        return e / jnp.sum(e, axis=1, keepdims=True)
    raise ValueError(f"unknown activation {name!r}")


# ------------------------------- Pallas kernel ------------------------------ #

def _sto_layer_kernel(x_ref, w_ref, b_ref, o_ref, *,
                      add_bn, out_act, valid_rows, valid_cols):
    """One (i, j, k) grid step of y = [x | eps] @ W + b (+BN) (+act).

    The f32 output block doubles as the accumulator (its BlockSpec index is
    constant across the k axis, so it stays resident in VMEM): it is
    initialized with the broadcast bias at k == 0, accumulated on every k,
    and post-processed (BN / activation) in place on the last k step.
    """
    k = pl.program_id(2)
    nk = pl.num_programs(2)

    @pl.when(k == 0)
    def _init():
        o_ref[...] = jnp.broadcast_to(b_ref[...], o_ref.shape)

    # bf16 MXU matmul, f32 accumulate directly into the output block.
    o_ref[...] += jnp.dot(x_ref[...], w_ref[...],
                          preferred_element_type=jnp.float32)

    @pl.when(k == nk - 1)
    def _epilogue():
        y = o_ref[...]
        if add_bn:
            # BatchNorm1d training-mode semantics (batch stats, gamma=1,
            # beta=0, eps=1e-5).  The whole (padded) batch lives in this tile;
            # padded rows are excluded via a *static* slice and the variance
            # is computed two-pass (centered) for numerical safety.
            yv = y[:valid_rows] if valid_rows < y.shape[0] else y
            inv_n = 1.0 / float(valid_rows)
            mean = jnp.sum(yv, axis=0, keepdims=True) * inv_n
            ctr = yv - mean
            var = jnp.sum(ctr * ctr, axis=0, keepdims=True) * inv_n
            y = (y - mean) * jax.lax.rsqrt(var + 1e-5)
        y = _apply_act_kernel(y, out_act, valid_cols)
        o_ref[...] = y.astype(o_ref.dtype)


# --------------------------------- wrapper ---------------------------------- #

class StoLayer:
    """JAX/Pallas re-implementation of engression's StoLayer forward pass."""

    def __init__(self, in_dim, out_dim, noise_dim=100, add_bn=False,
                 out_act=None, noise_std=1.0, verbose=True, *, key=None):
        self.in_dim = in_dim
        self.out_dim = out_dim
        self.noise_dim = noise_dim
        self.add_bn = add_bn
        self.noise_std = float(noise_std)
        self.verbose = verbose
        if out_act == 'softmax' and out_dim == 1:
            out_act = 'sigmoid'
        self.out_act = out_act

        # torch.nn.Linear default init: U(-1/sqrt(fan_in), 1/sqrt(fan_in)).
        if key is None:
            key = jax.random.PRNGKey(0)
        kw, kb = jax.random.split(key)
        fan_in = in_dim + noise_dim
        bound = 1.0 / math.sqrt(fan_in)
        self.weight = jax.random.uniform(kw, (out_dim, fan_in),
                                         minval=-bound, maxval=bound,
                                         dtype=jnp.float32)     # (out, fan_in)
        self.bias = jax.random.uniform(kb, (out_dim,),
                                       minval=-bound, maxval=bound,
                                       dtype=jnp.float32)

        # One-time weight packing: transpose + (8,128)-aligned zero pad + bf16
        # cast.  The concatenated [x | eps] input always has exactly fan_in
        # columns in W's column order, so a single pack serves every call.
        self.d_pad = _round_up(max(fan_in, 1), 128)
        self.out_pad = _round_up(out_dim, 128)
        w_pack = jnp.zeros((self.d_pad, self.out_pad), jnp.float32)
        w_pack = w_pack.at[:fan_in, :out_dim].set(self.weight.T)
        self.w_pack = w_pack.astype(jnp.bfloat16)
        b_pack = jnp.zeros((1, self.out_pad), jnp.float32)
        self.b_pack = b_pack.at[0, :out_dim].set(self.bias)

    # ---- epilogue- and VMEM-aware tile selection ---- #
    def _tiles(self, B):
        o_pad, d_pad = self.out_pad, self.d_pad
        if self.add_bn:
            # BatchNorm needs full-batch statistics per feature.
            # TODO(synk): two-pass scheme (per-tile partial sums, then
            # normalize) for very large batches instead of one full-batch tile.
            tm = _round_up(B, 8)
        else:
            tm = min(512, _round_up(B, 8))
        if self.out_act == 'softmax':
            # TODO(synk): streaming (online) softmax across j tiles for very
            # wide outputs; the full-row tile keeps a single-pass normalize.
            tn = o_pad
        else:
            tn = o_pad if o_pad <= 512 else _pick_tile(o_pad)
        tk = d_pad if d_pad <= 1024 else _pick_tile(d_pad)

        # Shrink to fit ~80% of device VMEM: reduce-depth first, then the
        # output-column tile, then the batch tile (where constraints allow).
        budget = int(0.8 * _vmem_capacity_bytes())
        for cand in (512, 256, 128):
            if _tile_footprint_bytes(tm, tn, tk) <= budget:
                break
            if cand < tk and d_pad % cand == 0:
                tk = cand
        if self.out_act != 'softmax':
            for cand in (512, 256, 128):
                if _tile_footprint_bytes(tm, tn, tk) <= budget:
                    break
                if cand < tn and o_pad % cand == 0:
                    tn = cand
        if not self.add_bn:
            while _tile_footprint_bytes(tm, tn, tk) > budget and tm > 8:
                tm = max(8, _round_up(tm // 2, 8))

        footprint = _tile_footprint_bytes(tm, tn, tk)
        vmem_limit = max(32 * 1024 * 1024, min(2 * footprint, budget))
        return tm, tn, tk, vmem_limit

    # ---- Pallas hot path ---- #
    def _forward(self, xe):
        B, D = xe.shape                     # D == in_dim + noise_dim
        o_dim, o_pad, d_pad = self.out_dim, self.out_pad, self.d_pad
        tm, tn, tk, vmem_limit = self._tiles(B)
        b_pad = _round_up(B, tm)

        # Cast to bf16; only pad when the shapes are not already aligned.
        xb = xe.astype(jnp.bfloat16)
        if (b_pad, d_pad) != (B, D):
            xb = jnp.pad(xb, ((0, b_pad - B), (0, d_pad - D)))

        grid = (b_pad // tm, o_pad // tn, d_pad // tk)

        kernel = functools.partial(
            _sto_layer_kernel,
            add_bn=self.add_bn, out_act=self.out_act,
            valid_rows=B, valid_cols=o_dim)

        out = pl.pallas_call(
            kernel,
            out_shape=jax.ShapeDtypeStruct((b_pad, o_pad), jnp.float32),
            grid_spec=pltpu.PrefetchScalarGridSpec(
                num_scalar_prefetch=0,
                grid=grid,
                in_specs=[
                    pl.BlockSpec((tm, tk), lambda i, j, k: (i, k)),
                    # Weight / bias block indices do not depend on i; for
                    # typical StoLayer sizes (nj == nk == 1) they are DMAed
                    # once and stay resident across the whole batch sweep.
                    pl.BlockSpec((tk, tn), lambda i, j, k: (k, j)),
                    pl.BlockSpec((1, tn), lambda i, j, k: (0, j)),
                ],
                out_specs=pl.BlockSpec((tm, tn), lambda i, j, k: (i, j)),
            ),
            compiler_params=pltpu.CompilerParams(
                dimension_semantics=("parallel", "parallel", "arbitrary"),
                vmem_limit_bytes=vmem_limit,
            ),
        )(xb, self.w_pack, self.b_pack)

        return out[:B, :o_dim]

    def __call__(self, x, *, noise_key):
        if isinstance(x, int):
            # Pure-noise sampling path: x is the number of samples.
            assert self.in_dim == 0
            cov = jnp.zeros((x, 0), jnp.float32)
        else:
            cov = jnp.asarray(x, jnp.float32)
            if cov.shape[1] < self.in_dim and self.verbose:
                print('Warning: covariate dimension does not aligned with the '
                      'specified input dimension; filling in the remaining '
                      'dimension with noise.')
        B = cov.shape[0]
        eps_dim = self.in_dim + self.noise_dim - cov.shape[1]
        if eps_dim > 0:
            eps = jax.random.normal(noise_key, (B, eps_dim),
                                    jnp.float32) * self.noise_std
            xe = jnp.concatenate([cov, eps], axis=1) if cov.shape[1] else eps
        else:
            xe = cov
        return self._forward(xe)


# ------------------------------ pure-JAX reference --------------------------- #

def _act_ref(y, name):
    if name is None:
        return y
    if name == 'relu':
        return jnp.maximum(y, 0.0)
    if name == 'sigmoid':
        return jax.nn.sigmoid(y)
    if name == 'tanh':
        return jnp.tanh(y)
    if name == 'elu':
        return jnp.where(y > 0.0, y, jnp.expm1(y))
    if name == 'softplus':
        return jnp.log1p(jnp.exp(-jnp.abs(y))) + jnp.maximum(y, 0.0)
    if name == 'softmax':
        return jax.nn.softmax(y, axis=1)
    raise ValueError(name)


def _reference_forward(layer, xe):
    # emulate the kernel's bf16 MXU inputs with f32 accumulation
    xb = xe.astype(jnp.bfloat16).astype(jnp.float32)
    wb = layer.weight.astype(jnp.bfloat16).astype(jnp.float32)
    y = xb @ wb.T + layer.bias
    if layer.add_bn:
        mean = jnp.mean(y, axis=0, keepdims=True)
        var = jnp.mean((y - mean) ** 2, axis=0, keepdims=True)
        y = (y - mean) * jax.lax.rsqrt(var + 1e-5)
    return _act_ref(y, layer.out_act)


# ----------------------------------- test ----------------------------------- #

if __name__ == "__main__":
    key = jax.random.PRNGKey(0)
    (k_p1, k_p2, k_p3, k_p4, k_x,
     k_n1, k_n2, k_n3, k_n4) = jax.random.split(key, 9)

    batch, in_dim, noise_dim, out_dim = 12, 24, 40, 16
    x = jax.random.normal(k_x, (batch, in_dim), dtype=jnp.float32)

    def eps_for(layer, k, b, xc):
        d = layer.in_dim + layer.noise_dim - xc
        return jax.random.normal(k, (b, d), jnp.float32) * layer.noise_std

    # 1) plain linear with Gaussian noise (deterministic given the key)
    layer = StoLayer(in_dim, out_dim, noise_dim, add_bn=False, out_act=None,
                     noise_std=1.0, key=k_p1)
    out = jax.block_until_ready(layer(x, noise_key=k_n1))
    assert out.shape == (batch, out_dim), out.shape
    ref = _reference_forward(
        layer, jnp.concatenate([x, eps_for(layer, k_n1, batch, in_dim)], 1))
    assert jnp.allclose(out, ref, atol=2e-2, rtol=2e-2), \
        float(jnp.max(jnp.abs(out - ref)))
    out_same = jax.block_until_ready(layer(x, noise_key=k_n1))
    assert jnp.allclose(out, out_same)                       # same key -> same draw
    out_diff = jax.block_until_ready(layer(x, noise_key=k_n2))
    assert float(jnp.max(jnp.abs(out - out_diff))) > 1e-3    # noise actually applied

    # 2) BatchNorm + ReLU epilogue (padded batch rows excluded from stats)
    layer_bn = StoLayer(in_dim, out_dim, noise_dim, add_bn=True, out_act='relu',
                        noise_std=1.0, key=k_p2)
    out_bn = jax.block_until_ready(layer_bn(x, noise_key=k_n2))
    ref_bn = _reference_forward(
        layer_bn, jnp.concatenate([x, eps_for(layer_bn, k_n2, batch, in_dim)], 1))
    assert jnp.allclose(out_bn, ref_bn, atol=2e-2, rtol=2e-2), \
        float(jnp.max(jnp.abs(out_bn - ref_bn)))

    # 3) softmax epilogue (padded feature columns masked)
    layer_sm = StoLayer(in_dim, out_dim, noise_dim, add_bn=False,
                        out_act='softmax', noise_std=1.0, key=k_p3)
    out_sm = jax.block_until_ready(layer_sm(x, noise_key=k_n3))
    ref_sm = _reference_forward(
        layer_sm, jnp.concatenate([x, eps_for(layer_sm, k_n3, batch, in_dim)], 1))
    assert jnp.allclose(out_sm, ref_sm, atol=2e-2, rtol=2e-2), \
        float(jnp.max(jnp.abs(out_sm - ref_sm)))
    assert jnp.allclose(jnp.sum(out_sm, axis=1), 1.0, atol=1e-3)

    # 4) zero-noise sanity: matches a plain linear layer
    layer_det = StoLayer(in_dim, out_dim, noise_dim, add_bn=False, out_act=None,
                         noise_std=0.0, key=k_p1)
    out_det = jax.block_until_ready(layer_det(x, noise_key=k_n4))
    ref_det = _reference_forward(
        layer_det, jnp.concatenate([x, jnp.zeros((batch, noise_dim),
                                                 jnp.float32)], 1))
    assert jnp.allclose(out_det, ref_det, atol=1e-2, rtol=1e-2), \
        float(jnp.max(jnp.abs(out_det - ref_det)))

    # 5) pure-noise sampling path (x given as an int, in_dim == 0)
    layer0 = StoLayer(0, 8, noise_dim=32, noise_std=1.0, key=k_p4)
    out0 = jax.block_until_ready(layer0(4, noise_key=k_n1))
    assert out0.shape == (4, 8) and bool(jnp.all(jnp.isfinite(out0)))
    ref0 = _reference_forward(layer0, eps_for(layer0, k_n1, 4, 0))
    assert jnp.allclose(out0, ref0, atol=2e-2, rtol=2e-2), \
        float(jnp.max(jnp.abs(out0 - ref0)))

    print("KERNEL_OK")
</pallas_src>

<mosaic_0001>
module attributes {stable_mosaic.version = 11 : i64} {
  func.func @_sto_layer_kernel(%arg0: i32, %arg1: i32, %arg2: i32, %arg3: memref<16x128xbf16, #tpu.memory_space<vmem>>, %arg4: memref<128x128xbf16, #tpu.memory_space<vmem>>, %arg5: memref<1x128xf32, #tpu.memory_space<vmem>>, %arg6: memref<16x128xf32, #tpu.memory_space<vmem>>) attributes {dimension_semantics = [#tpu.dimension_semantics<parallel>, #tpu.dimension_semantics<parallel>, #tpu.dimension_semantics<arbitrary>], iteration_bounds = array<i64: 1, 1, 1>, scalar_prefetch = 0 : i64, scratch_operands = 0 : i64, tpu.core_type = #tpu.core_type<tc>, window_params = [{transform_indices = @transform_0, window_bounds = array<i64: 16, 128>}, {transform_indices = @transform_1, window_bounds = array<i64: 128, 128>}, {transform_indices = @transform_2, window_bounds = array<i64: 1, 128>}, {transform_indices = @transform_3, window_bounds = array<i64: 16, 128>}]} {
    %c0_i32 = arith.constant 0 : i32
    %0 = arith.cmpi eq, %arg2, %c0_i32 : i32
    %1 = arith.extui %0 : i1 to i32
    %c0_i32_0 = arith.constant 0 : i32
    %2 = arith.cmpi ne, %1, %c0_i32_0 : i32
    scf.if %2 {
      %c0_10 = arith.constant 0 : index
      %c0_11 = arith.constant 0 : index
      %12 = vector.load %arg5[%c0_10, %c0_11] : memref<1x128xf32, #tpu.memory_space<vmem>>, vector<1x128xf32>
      %13 = vector.shape_cast %12 : vector<1x128xf32> to vector<1x128xf32>
      %14 = vector.broadcast %13 : vector<1x128xf32> to vector<16x128xf32>
      %c0_12 = arith.constant 0 : index
      %c0_13 = arith.constant 0 : index
      %15 = vector.load %arg6[%c0_12, %c0_13] : memref<16x128xf32, #tpu.memory_space<vmem>>, vector<16x128xf32>
      tpu.vector_store %arg6[%c0_12, %c0_13], %14 {strides = array<i32>} : memref<16x128xf32, #tpu.memory_space<vmem>>, vector<16x128xf32>,
    } else {
    }
    %c0 = arith.constant 0 : index
    %c0_1 = arith.constant 0 : index
    %3 = vector.load %arg6[%c0, %c0_1] : memref<16x128xf32, #tpu.memory_space<vmem>>, vector<16x128xf32>
    %c0_2 = arith.constant 0 : index
    %c0_3 = arith.constant 0 : index
    %4 = vector.load %arg3[%c0_2, %c0_3] : memref<16x128xbf16, #tpu.memory_space<vmem>>, vector<16x128xbf16>
    %c0_4 = arith.constant 0 : index
    %c0_5 = arith.constant 0 : index
    %5 = vector.load %arg4[%c0_4, %c0_5] : memref<128x128xbf16, #tpu.memory_space<vmem>>, vector<128x128xbf16>
    %cst = arith.constant dense<0.000000e+00> : vector<16x128xf32>
    %6 = tpu.matmul %4, %5, %cst {dimension_numbers = #tpu.dot_dimension_numbers<[1], [0], [0], [1], [0, 0, 1, 1], [], []>} : vector<16x128xbf16>, vector<128x128xbf16>, vector<16x128xf32> -> vector<16x128xf32>
    %7 = arith.addf %3, %6 : vector<16x128xf32>
    %c0_6 = arith.constant 0 : index
    %c0_7 = arith.constant 0 : index
    %8 = vector.load %arg6[%c0_6, %c0_7] : memref<16x128xf32, #tpu.memory_space<vmem>>, vector<16x128xf32>
    tpu.vector_store %arg6[%c0_6, %c0_7], %7 {strides = array<i32>} : memref<16x128xf32, #tpu.memory_space<vmem>>, vector<16x128xf32>,
    %c0_i32_8 = arith.constant 0 : i32
    %9 = arith.cmpi eq, %arg2, %c0_i32_8 : i32
    %10 = arith.extui %9 : i1 to i32
    %c0_i32_9 = arith.constant 0 : i32
    %11 = arith.cmpi ne, %10, %c0_i32_9 : i32
    scf.if %11 {
      %c0_10 = arith.constant 0 : index
      %c0_11 = arith.constant 0 : index
      %12 = vector.load %arg6[%c0_10, %c0_11] : memref<16x128xf32, #tpu.memory_space<vmem>>, vector<16x128xf32>
      %c0_12 = arith.constant 0 : index
      %c0_13 = arith.constant 0 : index
      %13 = vector.load %arg6[%c0_12, %c0_13] : memref<16x128xf32, #tpu.memory_space<vmem>>, vector<16x128xf32>
      tpu.vector_store %arg6[%c0_12, %c0_13], %12 {strides = array<i32>} : memref<16x128xf32, #tpu.memory_space<vmem>>, vector<16x128xf32>,
    } else {
    }
    return
  }
  func.func @transform_0(%arg0: i32, %arg1: i32, %arg2: i32) -> (i32, i32) {
    %c0_i32 = arith.constant 0 : i32
    return %arg0, %arg2 : i32, i32
  }
  func.func @transform_1(%arg0: i32, %arg1: i32, %arg2: i32) -> (i32, i32) {
    %c0_i32 = arith.constant 0 : i32
    return %arg2, %arg1 : i32, i32
  }
  func.func @transform_2(%arg0: i32, %arg1: i32, %arg2: i32) -> (i32, i32) {
    %c0_i32 = arith.constant 0 : i32
    %c0_i32_0 = arith.constant 0 : i32
    return %c0_i32, %arg1 : i32, i32
  }
  func.func @transform_3(%arg0: i32, %arg1: i32, %arg2: i32) -> (i32, i32) {
    %c0_i32 = arith.constant 0 : i32
    return %arg0, %arg1 : i32, i32
  }
}

</mosaic_0001>

<llo_original>
// kernel: tpu_custom_call.1
$region0: #{tpu_custom_call.1}
  #allocation0 [shape = 'u32[]', space=smem, size = 0x4, offset = 0x4, fixed_abs, tag = 'smem constant byte address 0x4 - core index']
  #allocation1 [shape = 'u32[144,128]{1,0:T(1,128)}', space=vmem, size = 0x12000, scoped, tag = 'internal scratch']
  %s0 = inlined_call_operand.hbm [shape: bf16[16,128], index: 0, kind: input, shape index: {}]
  %s1 = inlined_call_operand.hbm [shape: bf16[128,128], index: 1, kind: input, shape index: {}]
  %s2 = inlined_call_operand.vmem [shape: f32[1,128], index: 2, kind: input, shape index: {}]
  %s3 = inlined_call_operand.hbm [shape: f32[16,128], index: 3, kind: output, shape index: {}]
  %s4 = sld [smem:[#allocation0]]
  $region38: #{tpu_custom_call.1} parent=0
    _
  %s6 = ssub.s32 1, %s4
  %s7 = scalar_select 0, %s6, %s4
  $region1: #{tpu_custom_call.1} parent=0
    #allocation2 [shape = 'u8[4096]{0}', space=vmem, size = 0x1000, scoped, tag = 'input window, operand 0, single buffered']
    #allocation3 [shape = 's32[1]{0}', space=sflag, size = 0x4, scoped, tag = 'scoped memory for tpu_custom_call.1']
    #allocation4 [shape = 's32[1]{0}', space=sflag, size = 0x4, scoped, tag = 'scoped memory for tpu_custom_call.1']
    #allocation5 [shape = 'u8[32768]{0}', space=vmem, size = 0x8000, scoped, tag = 'input window, operand 1, single buffered']
    #allocation6 [shape = 's32[1]{0}', space=sflag, size = 0x4, scoped, tag = 'scoped memory for tpu_custom_call.1']
    #allocation7 [shape = 'u8[8192]{0}', space=vmem, size = 0x2000, scoped, tag = 'output window, operand 0, single buffered']
    %8 = vsyncpa [#allocation3], 0
    %9 = vsyncpa [#allocation6], 0
    %10 = vsyncpa [#allocation4], 0
    // Predicated region
    $region2: #{tpu_custom_call.1} parent=1 // pred_check
      _
    $region3: #{tpu_custom_call.1} parent=1 // pred_check_branch
      %12 = sbr.rel (0) target = $region5
    $region4: #{tpu_custom_call.1} parent=1 // pred_region
      %s14 = ssub.s32 128, 128
      %15 = vsyncadd [#allocation3], %s14
      %s16 = sshll.u32 [#allocation2], 4
      %s17 = int_to_ptr.vmem [resolvable:$true] %s16
      %22 = dma.hbm_to_vmem [thread:$0]  %s0, 128, %s17, [#allocation3], 64, 64, 4
    $region5: #{tpu_custom_call.1} parent=1 // pred_fallthru
      _
    // Predicated region
    $region6: #{tpu_custom_call.1} parent=1 // pred_check
      _
    $region7: #{tpu_custom_call.1} parent=1 // pred_check_branch
      %24 = sbr.rel (0) target = $region9
    $region8: #{tpu_custom_call.1} parent=1 // pred_region
      %s26 = ssub.s32 1024, 1024
      %27 = vsyncadd [#allocation6], %s26
      %s28 = sshll.u32 [#allocation5], 4
      %s29 = int_to_ptr.vmem [resolvable:$true] %s28
      %34 = dma.hbm_to_vmem [thread:$0]  %s1, 1024, %s29, [#allocation6], 64, 64, 4
    $region9: #{tpu_custom_call.1} parent=1 // pred_fallthru
      _
    // Predicated region
    $region10: #{tpu_custom_call.1} parent=1 // pred_check
      _
    $region11: #{tpu_custom_call.1} parent=1 // pred_check_branch
      %36 = sbr.rel (0) target = $region13
    $region12: #{tpu_custom_call.1} parent=1 // pred_region
      _
    $region13: #{tpu_custom_call.1} parent=1 // pred_fallthru
      _
    // Predicated region
    $region14: #{tpu_custom_call.1} parent=1 // pred_check
      _
    $region15: #{tpu_custom_call.1} parent=1 // pred_check_branch
      %38 = sbr.rel (0) target = $region17
    $region16: #{tpu_custom_call.1} parent=1 // pred_region
      %39 = dma.done [#allocation3], 128
    $region17: #{tpu_custom_call.1} parent=1 // pred_fallthru
      _
    // Predicated region
    $region18: #{tpu_custom_call.1} parent=1 // pred_check
      _
    $region19: #{tpu_custom_call.1} parent=1 // pred_check_branch
      %41 = sbr.rel (0) target = $region21
    $region20: #{tpu_custom_call.1} parent=1 // pred_region
      %42 = dma.done [#allocation6], 1024
    $region21: #{tpu_custom_call.1} parent=1 // pred_fallthru
      _
    %p44 = scmp.eq.s32.totalorder 0, 0
    // Predicated region
    $region22: #{tpu_custom_call.1} parent=1 // pred_check
      %p45 = pneg %p44
    $region23: #{tpu_custom_call.1} parent=1 // pred_check_branch
      %47 = sbr.rel (%p45) target = $region25
    $region24: #{tpu_custom_call.1} parent=1 // pred_region
      %v48 = vld [vmem:[%s2] sm:$0x1]
      %v50 = vlaneseq
      %v51 = vshrl.u32 %v50, 7
      %v52 = vsub.s32 0, %v51
      %v53 = vrot.slane %v48, %v52
      %55 = vst [vmem:[#allocation7] sm:$0xff] %v53
      %56 = vst [vmem:[#allocation7 + $0x8] sm:$0xff] %v53
    $region25: #{tpu_custom_call.1} parent=1 // pred_fallthru
      _
    %v57 = vld [vmem:[#allocation7] sm:$0xff]
    %v58 = vld [vmem:[#allocation7 + $0x8] sm:$0xff]
    %v59 = vld [vmem:[#allocation2] sm:$0xf]
    %v60 = vld [vmem:[#allocation2 + $0x4] sm:$0xf]
    %v61 = vld [vmem:[#allocation5] sm:$0xf]
    %v62 = vld [vmem:[#allocation5 + $0x4] sm:$0xf]
    %v63 = vld [vmem:[#allocation5 + $0x8] sm:$0xf]
    %v64 = vld [vmem:[#allocation5 + $0xc] sm:$0xf]
    %v65 = vld [vmem:[#allocation5 + $0x10] sm:$0xf]
    %v66 = vld [vmem:[#allocation5 + $0x14] sm:$0xf]
    %v67 = vld [vmem:[#allocation5 + $0x18] sm:$0xf]
    %v68 = vld [vmem:[#allocation5 + $0x1c] sm:$0xf]
    %v69 = vld [vmem:[#allocation5 + $0x20] sm:$0xf]
    %v70 = vld [vmem:[#allocation5 + $0x24] sm:$0xf]
    %v71 = vld [vmem:[#allocation5 + $0x28] sm:$0xf]
    %v72 = vld [vmem:[#allocation5 + $0x2c] sm:$0xf]
    %v73 = vld [vmem:[#allocation5 + $0x30] sm:$0xf]
    %v74 = vld [vmem:[#allocation5 + $0x34] sm:$0xf]
    %v75 = vld [vmem:[#allocation5 + $0x38] sm:$0xf]
    %v76 = vld [vmem:[#allocation5 + $0x3c] sm:$0xf]
    %v79 = vunpack.c.l.b16 %v59
    %v80 = vunpack.c.l.b16 %v60
    %v81 = vpack.c.b16 %v80, %v79
    %v99 = vunpack.c.l.b16 %v61
    %v100 = vunpack.c.l.b16 %v62
    %v101 = vunpack.c.l.b16 %v63
    %v102 = vunpack.c.l.b16 %v64
    %v103 = vunpack.c.l.b16 %v65
    %v104 = vunpack.c.l.b16 %v66
    %v105 = vunpack.c.l.b16 %v67
    %v106 = vunpack.c.l.b16 %v68
    %v107 = vunpack.c.l.b16 %v69
    %v108 = vunpack.c.l.b16 %v70
    %v109 = vunpack.c.l.b16 %v71
    %v110 = vunpack.c.l.b16 %v72
    %v111 = vunpack.c.l.b16 %v73
    %v112 = vunpack.c.l.b16 %v74
    %v113 = vunpack.c.l.b16 %v75
    %v114 = vunpack.c.l.b16 %v76
    %v115 = vpack.c.b16 %v100, %v99
    %v116 = vpack.c.b16 %v102, %v101
    %v117 = vpack.c.b16 %v104, %v103
    %v118 = vpack.c.b16 %v106, %v105
    %v119 = vpack.c.b16 %v108, %v107
    %v120 = vpack.c.b16 %v110, %v109
    %v121 = vpack.c.b16 %v112, %v111
    %v122 = vpack.c.b16 %v114, %v113
    %131 = vmatprep.subr.bf16.mxu0 0
    %132 = vmatpush1.bf16.msra.mxu0 %v115
    %133 = vmatprep.subr.bf16.mxu0 0
    %134 = vmatpush1.bf16.msra.mxu0 %v116
    %135 = vmatprep.subr.bf16.mxu0 0
    %136 = vmatpush1.bf16.msra.mxu0 %v117
    %137 = vmatprep.subr.bf16.mxu0 0
    %138 = vmatpush1.bf16.msra.mxu0 %v118
    %139 = vmatprep.subr.bf16.mxu0 0
    %140 = vmatpush1.bf16.msra.mxu0 %v119
    %141 = vmatprep.subr.bf16.mxu0 0
    %142 = vmatpush1.bf16.msra.mxu0 %v120
    %143 = vmatprep.subr.bf16.mxu0 0
    %144 = vmatpush1.bf16.msra.mxu0 %v121
    %145 = vmatprep.subr.bf16.mxu0 0
    %146 = vmatpush1.bf16.msra.mxu0 %v122
    %147 = vmatprep.subr.bf16.mxu0 0
    %148 = vmatpush1.bf16.msra.mxu0 0
    %149 = vmatprep.subr.bf16.mxu0 0
    %150 = vmatpush1.bf16.msra.mxu0 0
    %151 = vmatprep.subr.bf16.mxu0 0
    %152 = vmatpush1.bf16.msra.mxu0 0
    %153 = vmatprep.subr.bf16.mxu0 0
    %154 = vmatpush1.bf16.msra.mxu0 0
    %155 = vmatprep.subr.bf16.mxu0 0
    %156 = vmatpush1.bf16.msra.mxu0 0
    %157 = vmatprep.subr.bf16.mxu0 0
    %158 = vmatpush1.bf16.msra.mxu0 0
    %159 = vmatprep.subr.bf16.mxu0 0
    %160 = vmatpush1.bf16.msra.mxu0 0
    %161 = vmatprep.subr.bf16.mxu0 0
    %162 = vmatpush1.bf16.msra.mxu0 0
    %163 = vmatprep.mubr.bf16.mxu0 0
    %164 = vmatmul.mubr.bf16.gmra.mrb[0].mxu0 %v81
    %v165 = vpop.f32.mrb[0].mxu0
    %v166 = vadd.f32 0.0, %v165
    %v167 = vpop.f32.mrb[0].mxu0
    %v168 = vpop.f32.mrb[0].mxu0
    %v169 = vadd.f32 0.0, %v168
    %v170 = vpop.f32.mrb[0].mxu0
    %171 = vdwg.mxu0
    %v172 = vadd.f32 %v57, %v166
    %v173 = vadd.f32 %v58, %v169
    %174 = vst [vmem:[#allocation7] sm:$0xff] %v172
    %175 = vst [vmem:[#allocation7 + $0x8] sm:$0xff] %v173
    // Predicated region
    $region26: #{tpu_custom_call.1} parent=1 // pred_check
      %p176 = pneg %p44
    $region27: #{tpu_custom_call.1} parent=1 // pred_check_branch
      %178 = sbr.rel (%p176) target = $region29
    $region28: #{tpu_custom_call.1} parent=1 // pred_region
      %v179 = vld [vmem:[#allocation7] sm:$0xff]
      %v180 = vld [vmem:[#allocation7 + $0x8] sm:$0xff]
      %181 = vst [vmem:[#allocation7] sm:$0xff] %v179
      %182 = vst [vmem:[#allocation7 + $0x8] sm:$0xff] %v180
    $region29: #{tpu_custom_call.1} parent=1 // pred_fallthru
      _
    // Predicated region
    $region30: #{tpu_custom_call.1} parent=1 // pred_check
      _
    $region31: #{tpu_custom_call.1} parent=1 // pred_check_branch
      %184 = sbr.rel (0) target = $region33
    $region32: #{tpu_custom_call.1} parent=1 // pred_region
      %s186 = ssub.s32 256, 256
      %187 = vsyncadd [#allocation4], %s186
      %s188 = sshll.u32 [#allocation7], 4
      %s189 = int_to_ptr.vmem [resolvable:$true] %s188
      %194 = dma.vmem_to_hbm [thread:$0]  %s189, 256, %s3, [#allocation4], 128, 128, 8
    $region33: #{tpu_custom_call.1} parent=1 // pred_fallthru
      _
    // Predicated region
    $region34: #{tpu_custom_call.1} parent=1 // pred_check
      _
    $region35: #{tpu_custom_call.1} parent=1 // pred_check_branch
      %196 = sbr.rel (0) target = $region37
    $region36: #{tpu_custom_call.1} parent=1 // pred_region
      %197 = dma.done [#allocation4], 256
    $region37: #{tpu_custom_call.1} parent=1 // pred_fallthru
      _
    %198 = vsyncpa [#allocation3], 1
    %199 = vsyncpa [#allocation6], 1
    %200 = vsyncpa [#allocation4], 1

</llo_original>
